<compile_context>
chip_gen: v5e
topology: v5e:2x2
jax: 0.10.0
libtpu: 0.0.40
codegen_flags: <defaults>
</compile_context>

<pallas_src>
import functools

import numpy as np
import jax
import jax.numpy as jnp
from jax.experimental import pallas as pl
from jax.experimental.pallas import tpu as pltpu


def _round_up(x, m):
    return ((x + m - 1) // m) * m


def _cdiv(a, b):
    return (a + b - 1) // b


def _pos_embed_kernel(ids_ref, tab_ref, pos_ref, out_ref, *, row_chunk):
    # ids_ref: (1, TS, 1) int32   token ids for this (batch, seq-tile) block
    # tab_ref: (Vp, H)            token table, VMEM-resident (constant index_map)
    # pos_ref: (TS, H)  float32   positional rows for this seq tile (batch-invariant)
    # out_ref: (1, TS, H) float32
    _, ts, _ = ids_ref.shape
    vp, _ = tab_ref.shape

    tab = tab_ref[...]   # resident table; only DMA'd when the (constant) block changes

    # Small-vocab gather = one-hot @ table on the MXU, chunked over rows so the
    # live (rr, Vp) one-hot stays within a small vreg budget (no spills).
    # Hoist the iota: JAX does not CSE broadcasts inside the unrolled loop.
    iota_full = jax.lax.broadcasted_iota(jnp.int32, (row_chunk, vp), 1)
    for r0 in range(0, ts, row_chunk):
        rr = min(row_chunk, ts - r0)
        iota_v = (iota_full if rr == row_chunk
                  else jax.lax.broadcasted_iota(jnp.int32, (rr, vp), 1))
        ids_r = ids_ref[0, pl.ds(r0, rr), :]                       # (rr, 1)
        onehot = (ids_r == iota_v).astype(tab.dtype)               # (rr, Vp), exact 0/1
        emb = jnp.dot(onehot, tab,
                      preferred_element_type=jnp.float32)          # (rr, H) f32
        out_ref[0, pl.ds(r0, rr), :] = (
            emb + pos_ref[pl.ds(r0, rr), :]).astype(out_ref.dtype)


def _choose_seq_tile(S, B, block_seq):
    sp8 = _round_up(S, 8)
    ts = min(_round_up(block_seq, 8), sp8)
    # v7x has 2 TensorCores per chip; make sure the parallel grid has >= 4
    # steps when the problem size allows it (no effect on v5e/v6e: 1 TC).
    while ts > 8 and B * _cdiv(sp8, ts) < 4:
        ts = max(8, _round_up(ts // 2, 8))
    return ts


def positional_embeddings_forward(ids, token_table, pos_table, *, block_seq=512):
    """ids: [B, S] int32 -> [B, S, H] float32.

    token_table: [V, H] (f32 or bf16), pos_table: [L, H] f32 with S <= L - 1
    (positions are 1..S, matching the PyTorch forward).
    """
    B, S = ids.shape
    V, H = token_table.shape
    L = pos_table.shape[0]
    assert S <= L - 1, "sequence length exceeds positional table (positions are 1..S)"
    # One-hot fallback regime only: table must be small & VMEM-resident.
    # TODO(synk): HBM DMA-gather path for realistic vocabulary sizes.
    assert V <= 1024, "one-hot fallback path only supports small vocabularies (V <= 1024)"

    Vp = _round_up(V, 128)           # lane-dense one-hot / MXU K dimension
    TS = _choose_seq_tile(S, B, block_seq)
    Sp = _round_up(S, TS)
    n_s = Sp // TS

    # Bound the live one-hot chunk to ~64 KiB of f32 (about 16 vregs).
    row_chunk = min(TS, max(8, ((64 * 1024) // (Vp * 4)) // 8 * 8))

    tab_itemsize = int(jnp.dtype(token_table.dtype).itemsize)
    tok_tab_p = jnp.pad(token_table, ((0, Vp - V), (0, 0)))        # (Vp, H)

    # Positional rows 1..S — a tiny static slice of the table, NOT duplicated
    # over the batch; padded seq rows are zero and sliced off at the end.
    pos_used = jnp.pad(pos_table[1:S + 1].astype(jnp.float32),
                       ((0, Sp - S), (0, 0)))                      # (Sp, H)

    # Clamp OOB token ids (nn.Embedding would raise; clamp returns row V-1).
    ids_p = jnp.clip(ids.astype(jnp.int32), 0, V - 1)
    ids_p = jnp.pad(ids_p, ((0, 0), (0, Sp - S))).reshape(B, Sp, 1)

    grid = (n_s, B)   # batch innermost -> pos block index constant across it

    # VMEM budget: resident table (double-buffered by default) + per-step blocks.
    block_bytes = TS * 4 + 2 * TS * H * 4          # ids + pos + out blocks
    vmem_needed = 2 * Vp * H * tab_itemsize + 2 * block_bytes + (1 << 20)
    vmem_limit = int(min(64 << 20, max(16 << 20, 2 * vmem_needed)))

    cost = pl.CostEstimate(
        flops=int(2 * B * Sp * Vp * H),            # the actual one-hot matmul work
        transcendentals=0,
        bytes_accessed=int(B * Sp * 4              # ids
                           + Vp * H * tab_itemsize # table, read once
                           + Sp * H * 4            # positional rows, read once
                           + B * Sp * H * 4),      # output
    )

    out_p = pl.pallas_call(
        functools.partial(_pos_embed_kernel, row_chunk=row_chunk),
        out_shape=jax.ShapeDtypeStruct((B, Sp, H), jnp.float32),
        grid=grid,
        in_specs=[
            pl.BlockSpec((1, TS, 1), lambda s, b: (b, s, 0)),   # ids tile
            pl.BlockSpec((Vp, H), lambda s, b: (0, 0)),         # token table: resident
            pl.BlockSpec((TS, H), lambda s, b: (s, 0)),         # pos rows: batch-invariant
        ],
        out_specs=pl.BlockSpec((1, TS, H), lambda s, b: (b, s, 0)),
        compiler_params=pltpu.CompilerParams(
            dimension_semantics=("parallel", "parallel"),
            vmem_limit_bytes=vmem_limit),
        cost_estimate=cost,
    )(ids_p, tok_tab_p, pos_used)

    return out_p[:, :S, :]


def make_positional_table(max_len, h_size):
    """Exact replica of position_encoding_init (float32)."""
    encoding = np.array(
        [[pos / np.power(10000, 2 * i / h_size) for i in range(h_size)]
         if pos != 0 else np.zeros(h_size)
         for pos in range(max_len)]
    )
    encoding[1:, 0::2] = np.sin(encoding[1:, 0::2])
    encoding[1:, 1::2] = np.cos(encoding[1:, 1::2])
    return jnp.asarray(encoding, dtype=jnp.float32)


def make_token_table(key, vocab_size, h_size, padding_idx=0):
    tbl = 0.02 * jax.random.normal(key, (vocab_size, h_size), dtype=jnp.float32)
    # padding_idx row is zero (matches nn.Embedding padding semantics)
    tbl = tbl.at[padding_idx].set(0.0)
    return tbl


if __name__ == "__main__":
    # Small shapes consistent with the module's forward: input is [batch, seq]
    B, S = 2, 8
    vocab_size, max_len, h_size = 32, 16, 32

    key = jax.random.PRNGKey(0)
    k_tok, k_ids = jax.random.split(key)

    token_table = make_token_table(k_tok, vocab_size, h_size, padding_idx=0)
    pos_table = make_positional_table(max_len, h_size)

    ids = jax.random.randint(k_ids, (B, S), minval=0, maxval=vocab_size,
                             dtype=jnp.int32)

    out = positional_embeddings_forward(ids, token_table, pos_table)
    out = jax.block_until_ready(out)

    # Pure-JAX reference check (same semantics as the PyTorch forward)
    positions = jnp.tile(jnp.arange(1, S + 1, dtype=jnp.int32), (B, 1))
    ref = token_table[ids] + pos_table[positions]
    assert out.shape == (B, S, h_size)
    np.testing.assert_allclose(np.asarray(out), np.asarray(ref),
                               rtol=1e-5, atol=1e-5)

    print("KERNEL_OK")
</pallas_src>

<mosaic_0001>
module attributes {stable_mosaic.version = 11 : i64} {
  func.func @_pos_embed_kernel(%arg0: i32, %arg1: i32, %arg2: memref<1x8x1xi32, #tpu.memory_space<vmem>>, %arg3: memref<128x32xf32, #tpu.memory_space<vmem>>, %arg4: memref<8x32xf32, #tpu.memory_space<vmem>>, %arg5: memref<1x8x32xf32, #tpu.memory_space<vmem>>) attributes {dimension_semantics = [#tpu.dimension_semantics<parallel>, #tpu.dimension_semantics<parallel>], iteration_bounds = array<i64: 1, 2>, scalar_prefetch = 0 : i64, scratch_operands = 0 : i64, tpu.core_type = #tpu.core_type<tc>, window_params = [{transform_indices = @transform_0, window_bounds = array<i64: 1, 8, 1>}, {pipeline_mode = #tpu.pipeline_mode<synchronous>, transform_indices = @transform_1, window_bounds = array<i64: 128, 32>}, {transform_indices = @transform_2, window_bounds = array<i64: 8, 32>}, {transform_indices = @transform_3, window_bounds = array<i64: 1, 8, 32>}]} {
    %c0 = arith.constant 0 : index
    %c0_0 = arith.constant 0 : index
    %0 = vector.load %arg3[%c0, %c0_0] : memref<128x32xf32, #tpu.memory_space<vmem>>, vector<128x32xf32>
    %1 = tpu.iota {dimensions = array<i32: 1>} : vector<8x128xi32>
    %c0_1 = arith.constant 0 : index
    %c0_2 = arith.constant 0 : index
    %c0_3 = arith.constant 0 : index
    %2 = vector.load %arg2[%c0_1, %c0_2, %c0_3] : memref<1x8x1xi32, #tpu.memory_space<vmem>>, vector<1x8x1xi32>
    %3 = vector.shape_cast %2 : vector<1x8x1xi32> to vector<8x1xi32>
    %4 = vector.broadcast %3 : vector<8x1xi32> to vector<8x128xi32>
    %5 = arith.cmpi eq, %4, %1 : vector<8x128xi32>
    %6 = arith.extui %5 : vector<8x128xi1> to vector<8x128xi32>
    %7 = arith.sitofp %6 : vector<8x128xi32> to vector<8x128xf32>
    %cst = arith.constant dense<0.000000e+00> : vector<8x32xf32>
    %8 = tpu.matmul %7, %0, %cst {dimension_numbers = #tpu.dot_dimension_numbers<[1], [0], [0], [1], [0, 0, 1, 1], [], []>} : vector<8x128xf32>, vector<128x32xf32>, vector<8x32xf32> -> vector<8x32xf32>
    %c0_4 = arith.constant 0 : index
    %c0_5 = arith.constant 0 : index
    %9 = vector.load %arg4[%c0_4, %c0_5] : memref<8x32xf32, #tpu.memory_space<vmem>>, vector<8x32xf32>
    %10 = arith.addf %8, %9 : vector<8x32xf32>
    %c0_6 = arith.constant 0 : index
    %c0_7 = arith.constant 0 : index
    %c0_8 = arith.constant 0 : index
    %11 = vector.load %arg5[%c0_6, %c0_7, %c0_8] : memref<1x8x32xf32, #tpu.memory_space<vmem>>, vector<1x8x32xf32>
    %12 = vector.shape_cast %11 : vector<1x8x32xf32> to vector<8x32xf32>
    %13 = vector.shape_cast %10 : vector<8x32xf32> to vector<1x8x32xf32>
    tpu.vector_store %arg5[%c0_6, %c0_7, %c0_8], %13 {strides = array<i32>} : memref<1x8x32xf32, #tpu.memory_space<vmem>>, vector<1x8x32xf32>,
    return
  }
  func.func @transform_0(%arg0: i32, %arg1: i32) -> (i32, i32, i32) {
    %c0_i32 = arith.constant 0 : i32
    %c0_i32_0 = arith.constant 0 : i32
    return %arg1, %arg0, %c0_i32 : i32, i32, i32
  }
  func.func @transform_1(%arg0: i32, %arg1: i32) -> (i32, i32) {
    %c0_i32 = arith.constant 0 : i32
    %c0_i32_0 = arith.constant 0 : i32
    %c0_i32_1 = arith.constant 0 : i32
    return %c0_i32, %c0_i32_0 : i32, i32
  }
  func.func @transform_2(%arg0: i32, %arg1: i32) -> (i32, i32) {
    %c0_i32 = arith.constant 0 : i32
    %c0_i32_0 = arith.constant 0 : i32
    return %arg0, %c0_i32 : i32, i32
  }
  func.func @transform_3(%arg0: i32, %arg1: i32) -> (i32, i32, i32) {
    %c0_i32 = arith.constant 0 : i32
    %c0_i32_0 = arith.constant 0 : i32
    return %arg1, %arg0, %c0_i32 : i32, i32, i32
  }
}

</mosaic_0001>

<llo_original>
// kernel: tpu_custom_call.1
$region0: #{tpu_custom_call.1}
  #allocation0 [shape = 'u32[]', space=smem, size = 0x4, offset = 0x4, fixed_abs, tag = 'smem constant byte address 0x4 - core index']
  #allocation1 [shape = 'u32[72,128]{1,0:T(1,128)}', space=vmem, size = 0x9000, scoped, tag = 'internal scratch']
  %s0 = inlined_call_operand.vmem [shape: s32[2,8,1], index: 0, kind: input, shape index: {}]
  %s1 = inlined_call_operand.vmem [shape: f32[128,32], index: 1, kind: input, shape index: {}]
  %s2 = inlined_call_operand.vmem [shape: f32[8,32], index: 2, kind: input, shape index: {}]
  %s3 = inlined_call_operand.hbm [shape: f32[2,8,32], index: 3, kind: output, shape index: {}]
  %s4 = sld [smem:[#allocation0]]
  $region45: #{tpu_custom_call.1} parent=0
    _
  %s6 = ssub.s32 1, %s4
  %s7 = scalar_select 0, %s6, %s4
  $region1: #{tpu_custom_call.1} parent=0
    #allocation2 [shape = 'u8[8192]{0}', space=vmem, size = 0x2000, scoped, tag = 'output window, operand 0']
    #allocation3 [shape = 's32[2]{0}', space=sflag, size = 0x8, scoped, tag = 'scoped memory for tpu_custom_call.1']
    %8 = vsyncpa [#allocation3], 0
    %s9 = scalar_lea.sflag [#allocation3], 1
    %10 = vsyncpa %s9, 0
    loop: start=0, step=1, limit=4
    $region2: #{tpu_custom_call.1} parent=1 // loop_pre_header
      _
    $region3: #{tpu_custom_call.1} parent=1 // loop_header
      %s12 = sphi 0, %s16
      %p13 = scmp.ge.s32.totalorder %s12, 4
      %s19 = sphi 0, %s31
      %s20 = sphi 0, %s27
      %s21 = sphi 0, %s19
      %s22 = sphi 0, %s20
      %s23 = sphi 0, %s21
      %s24 = sphi 0, %s22
      %s36 = sphi 0, %s38
      %s39 = sphi 0, %s36
      %s40 = sphi 0, %s39
      %s56 = sphi 0, %s40
      %s60 = sphi 0, %s60
      %s62 = sphi 0, %s60
      %s63 = sphi 0, %s62
      %s77 = sphi 0, %s63
      %s83 = sphi 0, %s85
      %s86 = sphi 0, %s83
      %s87 = sphi 0, %s86
      %s103 = sphi 0, %s87
      %s111 = sphi 0, %s113
      %s114 = sphi 0, %s111
      %s115 = sphi 0, %s114
      %s131 = sphi 0, %s115
    $region4: #{tpu_custom_call.1} parent=1 // loop_header_branch
      %15 = sbr.rel (%p13) target = $region8
    $region5: #{tpu_custom_call.1} parent=1 // loop_body
      %s17 = ssub.s32 %s12, 1
      %s18 = ssub.s32 %s12, 2
      %s25 = sadd.s32 1, %s20
      %p26 = scmp.ge.s32.totalorder %s25, 2
      %s27 = scalar_select %p26, 0, %s25
      %s28 = sadd.s32 1, %s19
      %s29 = scalar_select %p26, %s28, %s19
      %p30 = scmp.ge.s32.totalorder %s29, 1
      %s31 = scalar_select %p30, 0, %s29
      %s32 = ssub.s32 %s20, %s27
      %s33 = ssub.s32 %s19, %s31
      %s34 = sor.u32 %s32, %s33
      %p35 = scmp.eq.s32.totalorder %s34, 0
      %s37 = sadd.s32 %s36, 1
      %s38 = scalar_select %p35, %s36, %s37
      %p41 = pneg %p35
      %p42 = scmp.eq.s32.totalorder %s12, 1
      %p43 = por %p41, %p42
      %p44 = scmp.ne.s32.totalorder %s36, %s39
      %p45 = scmp.eq.s32.totalorder %s12, 0
      %p46 = por %p44, %p45
      %p47 = scmp.ne.s32.totalorder %s36, %s39
      %p48 = scmp.eq.s32.totalorder %s17, 1
      %p49 = por %p47, %p48
      %p50 = scmp.ne.s32.totalorder %s39, %s40
      %p51 = scmp.eq.s32.totalorder %s17, 0
      %p52 = por %p50, %p51
      %p53 = scmp.ne.s32.totalorder %s39, %s40
      %p54 = scmp.eq.s32.totalorder %s18, 1
      %p55 = por %p53, %p54
      %p57 = scmp.ne.s32.totalorder %s40, %s56
      %p58 = scmp.eq.s32.totalorder %s18, 0
      %p59 = por %p57, %p58
      %s61 = sadd.s32 %s60, 1
      %p64 = scmp.eq.s32.totalorder %s12, 1
      %p65 = scmp.ne.s32.totalorder %s60, %s62
      %p66 = scmp.eq.s32.totalorder %s12, 0
      %p67 = por %p65, %p66
      %p68 = scmp.ne.s32.totalorder %s60, %s62
      %p69 = scmp.eq.s32.totalorder %s17, 1
      %p70 = por %p68, %p69
      %p71 = scmp.ne.s32.totalorder %s62, %s63
      %p72 = scmp.eq.s32.totalorder %s17, 0
      %p73 = por %p71, %p72
      %p74 = scmp.ne.s32.totalorder %s62, %s63
      %p75 = scmp.eq.s32.totalorder %s18, 1
      %p76 = por %p74, %p75
      %p78 = scmp.ne.s32.totalorder %s63, %s77
      %p79 = scmp.eq.s32.totalorder %s18, 0
      %p80 = por %p78, %p79
      %s81 = ssub.s32 %s19, %s31
      %p82 = scmp.eq.s32.totalorder %s81, 0
      %s84 = sadd.s32 %s83, 1
      %s85 = scalar_select %p82, %s83, %s84
      %p88 = pneg %p82
      %p89 = scmp.eq.s32.totalorder %s12, 1
      %p90 = por %p88, %p89
      %p91 = scmp.ne.s32.totalorder %s83, %s86
      %p92 = scmp.eq.s32.totalorder %s12, 0
      %p93 = por %p91, %p92
      %p94 = scmp.ne.s32.totalorder %s83, %s86
      %p95 = scmp.eq.s32.totalorder %s17, 1
      %p96 = por %p94, %p95
      %p97 = scmp.ne.s32.totalorder %s86, %s87
      %p98 = scmp.eq.s32.totalorder %s17, 0
      %p99 = por %p97, %p98
      %p100 = scmp.ne.s32.totalorder %s86, %s87
      %p101 = scmp.eq.s32.totalorder %s18, 1
      %p102 = por %p100, %p101
      %p104 = scmp.ne.s32.totalorder %s87, %s103
      %p105 = scmp.eq.s32.totalorder %s18, 0
      %p106 = por %p104, %p105
      %s107 = ssub.s32 %s20, %s27
      %s108 = ssub.s32 %s19, %s31
      %s109 = sor.u32 %s107, %s108
      %p110 = scmp.eq.s32.totalorder %s109, 0
      %s112 = sadd.s32 %s111, 1
      %s113 = scalar_select %p110, %s111, %s112
      %p116 = pneg %p110
      %p117 = scmp.eq.s32.totalorder %s12, 1
      %p118 = por %p116, %p117
      %p119 = scmp.ne.s32.totalorder %s111, %s114
      %p120 = scmp.eq.s32.totalorder %s12, 0
      %p121 = por %p119, %p120
      %p122 = scmp.ne.s32.totalorder %s111, %s114
      %p123 = scmp.eq.s32.totalorder %s17, 1
      %p124 = por %p122, %p123
      %p125 = scmp.ne.s32.totalorder %s114, %s115
      %p126 = scmp.eq.s32.totalorder %s17, 0
      %p127 = por %p125, %p126
      %p128 = scmp.ne.s32.totalorder %s114, %s115
      %p129 = scmp.eq.s32.totalorder %s18, 1
      %p130 = por %p128, %p129
      %p132 = scmp.ne.s32.totalorder %s115, %s131
      %p133 = scmp.eq.s32.totalorder %s18, 0
      %p134 = por %p132, %p133
      %p135 = scmp.le.s32.totalorder 1, %s12
      %p136 = scmp.lt.s32.totalorder %s12, 3
      %p137 = pnand %p135, %p136
      %p138 = pneg %p137
      // Predicated region
      $region9: #{tpu_custom_call.1} parent=5 // pred_check
        _
      $region10: #{tpu_custom_call.1} parent=5 // pred_check_branch
        %140 = sbr.rel (%p137) target = $region12
      $region11: #{tpu_custom_call.1} parent=5 // pred_region
        %s141 = ssub.s32 %s12, 1
        // Predicated region
        $region13: #{tpu_custom_call.1} parent=11 // pred_check
          %p142 = pneg %p73
        $region14: #{tpu_custom_call.1} parent=11 // pred_check_branch
          %144 = sbr.rel (%p142) target = $region16
        $region15: #{tpu_custom_call.1} parent=11 // pred_region
          _
        $region16: #{tpu_custom_call.1} parent=11 // pred_fallthru
          _
        // Predicated region
        $region17: #{tpu_custom_call.1} parent=11 // pred_check
          %p145 = pneg %p99
        $region18: #{tpu_custom_call.1} parent=11 // pred_check_branch
          %147 = sbr.rel (%p145) target = $region20
        $region19: #{tpu_custom_call.1} parent=11 // pred_region
          %p148 = scmp.lt.s32.totalorder %s21, 0
          %s149 = scalar_select %p148, %s21, 0
          %s150 = smul.addr %s149, 8
          %s151 = scalar_lea.vmem %s2, %s150
        $region20: #{tpu_custom_call.1} parent=11 // pred_fallthru
          _
      $region12: #{tpu_custom_call.1} parent=5 // pred_fallthru
        _
      %p152 = scmp.lt.s32.totalorder %s12, 2
      // Predicated region
      $region21: #{tpu_custom_call.1} parent=5 // pred_check
        %p153 = pneg %p152
      $region22: #{tpu_custom_call.1} parent=5 // pred_check_branch
        %155 = sbr.rel (%p153) target = $region24
      $region23: #{tpu_custom_call.1} parent=5 // pred_region
        // Predicated region
        $region25: #{tpu_custom_call.1} parent=23 // pred_check
          %p156 = pneg %p46
        $region26: #{tpu_custom_call.1} parent=23 // pred_check_branch
          %158 = sbr.rel (%p156) target = $region28
        $region27: #{tpu_custom_call.1} parent=23 // pred_region
          %p159 = scmp.lt.s32.totalorder %s20, 1
          %s160 = scalar_select %p159, %s20, 1
          %p161 = scmp.lt.s32.totalorder %s19, 0
          %s162 = scalar_select %p161, %s19, 0
          %s163 = sadd.s32 %s162, %s160
          %s164 = smul.addr %s163, 8
          %s165 = scalar_lea.vmem %s0, %s164
        $region28: #{tpu_custom_call.1} parent=23 // pred_fallthru
          _
      $region24: #{tpu_custom_call.1} parent=5 // pred_fallthru
        _
      %p166 = scmp.le.s32.totalorder 1, %s12
      %p167 = scmp.lt.s32.totalorder %s12, 3
      %p168 = pnand %p166, %p167
      %p169 = pneg %p168
      // Predicated region
      $region29: #{tpu_custom_call.1} parent=5 // pred_check
        _
      $region30: #{tpu_custom_call.1} parent=5 // pred_check_branch
        %171 = sbr.rel (%p168) target = $region32
      $region31: #{tpu_custom_call.1} parent=5 // pred_region
        %s172 = ssub.s32 %s12, 1
        %p173 = scmp.lt.s32.totalorder %s22, 1
        %s174 = scalar_select %p173, %s22, 1
        %p175 = scmp.lt.s32.totalorder %s21, 0
        %s176 = scalar_select %p175, %s21, 0
        %s177 = sadd.s32 %s176, %s174
        %s178 = smul.addr %s177, 8
        %s179 = scalar_lea.vmem %s0, %s178
        %p180 = pneg %p52
        %p181 = pneg %p49
        %p182 = pneg %p73
        %p183 = pneg %p70
        %p184 = scmp.lt.s32.totalorder %s21, 0
        %s185 = scalar_select %p184, %s21, 0
        %s186 = smul.addr %s185, 8
        %s187 = scalar_lea.vmem %s2, %s186
        %p188 = pneg %p99
        %p189 = pneg %p96
        %p190 = pneg %p127
        %p191 = pneg %p124
        %s192 = sand.u32 %s114, 1
        %s193 = scalar_lea.sflag [#allocation3], %s192
        %s194 = sand.u32 %s114, 1
        %s195 = smul.addr %s194, 8
        %s196 = scalar_lea.vmem [#allocation2], %s195
        %p197 = scmp.lt.s32.totalorder %s22, 1
        %s198 = scalar_select %p197, %s22, 1
        %p199 = scmp.lt.s32.totalorder %s21, 0
        %s200 = scalar_select %p199, %s21, 0
        %s201 = sadd.s32 %s200, %s198
        %s202 = smul.addr %s201, 8
        %s203 = scalar_lea.vmem %s0, %s202
        %p204 = scmp.lt.s32.totalorder %s21, 0
        %s205 = scalar_select %p204, %s21, 0
        %s206 = smul.addr %s205, 8
        %s207 = scalar_lea.vmem %s2, %s206
        %v208 = vld [vmem:[%s1] sm:$0xff]
        %v209 = vld [vmem:[%s1 + $0x8] sm:$0xff]
        %v210 = vld [vmem:[%s1 + $0x10] sm:$0xff]
        %v211 = vld [vmem:[%s1 + $0x18] sm:$0xff]
        %v212 = vld [vmem:[%s1 + $0x20] sm:$0xff]
        %v213 = vld [vmem:[%s1 + $0x28] sm:$0xff]
        %v214 = vld [vmem:[%s1 + $0x30] sm:$0xff]
        %v215 = vld [vmem:[%s1 + $0x38] sm:$0xff]
        %v216 = vld [vmem:[%s1 + $0x40] sm:$0xff]
        %v217 = vld [vmem:[%s1 + $0x48] sm:$0xff]
        %v218 = vld [vmem:[%s1 + $0x50] sm:$0xff]
        %v219 = vld [vmem:[%s1 + $0x58] sm:$0xff]
        %v220 = vld [vmem:[%s1 + $0x60] sm:$0xff]
        %v221 = vld [vmem:[%s1 + $0x68] sm:$0xff]
        %v222 = vld [vmem:[%s1 + $0x70] sm:$0xff]
        %v223 = vld [vmem:[%s1 + $0x78] sm:$0xff]
        %v224 = vlaneseq
        %v225 = vand.u32 %v224, 127
        %v226 = vld [vmem:[%s203] sm:$0xff]
        %227 = vset.pattern.permute.xlu0 0
        %228 = vperm.xlu0 %227, %v226
        %v229 = vpop.permute.xlu0 %228
        %vm230 = vcmp.eq.s32.totalorder %v229, %v225
        %v231 = vsel %vm230, 1, 0
        %v232 = vcvt.s32.f32 %v231
        %v233 = vld [vmem:[%s207] sm:$0xff]
        %234 = vmatpush.msra.mxu0 %v223
        %235 = vmatpush.msra.mxu0 %v222
        %236 = vmatpush.msra.mxu0 %v221
        %237 = vmatpush.msra.mxu0 %v220
        %238 = vmatpush.msra.mxu0 %v219
        %239 = vmatpush.msra.mxu0 %v218
        %240 = vmatpush.msra.mxu0 %v217
        %241 = vmatpush.msra.mxu0 %v216
        %242 = vmatpush.msra.mxu0 %v215
        %243 = vmatpush.msra.mxu0 %v214
        %244 = vmatpush.msra.mxu0 %v213
        %245 = vmatpush.msra.mxu0 %v212
        %246 = vmatpush.msra.mxu0 %v211
        %247 = vmatpush.msra.mxu0 %v210
        %248 = vmatpush.msra.mxu0 %v209
        %249 = vmatpush.msra.mxu0 %v208
        %250 = vmatmul.f32.gmra.mxu0 %v232
        %v251 = vpop.f32.mrf.mxu0
        %v252 = vadd.f32 %v233, %v251
        %253 = vdwg.mxu0
        %vm254 = vcmask 261120
        %255 = vst.msk [vmem:[%s196] sm:$0xff] %vm254, %v252
        %s256 = sand.u32 %s114, 1
        %s257 = scalar_lea.sflag [#allocation3], %s256
        %s258 = sand.u32 %s114, 1
        %s259 = smul.addr %s258, 8
        %s260 = scalar_lea.vmem [#allocation2], %s259
        // Predicated region
        $region33: #{tpu_custom_call.1} parent=31 // pred_check
          %p261 = pneg %p124
        $region34: #{tpu_custom_call.1} parent=31 // pred_check_branch
          %263 = sbr.rel (%p261) target = $region36
        $region35: #{tpu_custom_call.1} parent=31 // pred_region
          %265 = vsyncadd %s257, 0
          %s266 = sadd.s32 %s21, %s22
          %s267 = smul.addr %s266, 8
          %s268 = scalar_lea.hbm %s3, %s267
          %s270 = sshll.u32 %s260, 4
          %s271 = int_to_ptr.vmem [resolvable:$true] %s270
          %s272 = sshll.u32 %s268, 4
          %s273 = int_to_ptr.hbm [resolvable:$true] %s272
          %275 = dma.vmem_to_hbm [thread:$0]  %s271, 128, %s273, %s257
        $region36: #{tpu_custom_call.1} parent=31 // pred_fallthru
          _
      $region32: #{tpu_custom_call.1} parent=5 // pred_fallthru
        _
      %p276 = scmp.le.s32.totalorder 2, %s12
      // Predicated region
      $region37: #{tpu_custom_call.1} parent=5 // pred_check
        %p277 = pneg %p276
      $region38: #{tpu_custom_call.1} parent=5 // pred_check_branch
        %279 = sbr.rel (%p277) target = $region40
      $region39: #{tpu_custom_call.1} parent=5 // pred_region
        %s280 = ssub.s32 %s12, 2
        // Predicated region
        $region41: #{tpu_custom_call.1} parent=39 // pred_check
          %p281 = pneg %p130
        $region42: #{tpu_custom_call.1} parent=39 // pred_check_branch
          %283 = sbr.rel (%p281) target = $region44
        $region43: #{tpu_custom_call.1} parent=39 // pred_region
          %s284 = sand.u32 %s115, 1
          %s285 = scalar_lea.sflag [#allocation3], %s284
          %s286 = sand.u32 %s115, 1
          %s287 = smul.addr %s286, 8
          %s288 = scalar_lea.vmem [#allocation2], %s287
          %290 = dma.done %s285, 128
        $region44: #{tpu_custom_call.1} parent=39 // pred_fallthru
          _
      $region40: #{tpu_custom_call.1} parent=5 // pred_fallthru
        _
    $region6: #{tpu_custom_call.1} parent=1 // loop_footer
      %s16 = sadd.s32 1, %s12
    $region7: #{tpu_custom_call.1} parent=1 // loop_footer_branch
      %11 = sbr.rel target = $region3
    $region8: #{tpu_custom_call.1} parent=1 // loop_exit
      _
    %291 = vsyncpa [#allocation3], 1
    %s292 = scalar_lea.sflag [#allocation3], 1
    %293 = vsyncpa %s292, 1

</llo_original>
